<compile_context>
chip_gen: v6e
topology: v6e:2x2x1
jax: 0.10.0
libtpu: 0.0.40
codegen_flags: <defaults>
</compile_context>

<pallas_src>
import jax
import jax.numpy as jnp
from jax import lax
from jax.experimental import pallas as pl
from jax.experimental.pallas import tpu as pltpu

# Contract lhs dim 1 with rhs dim 1 (lhs @ rhs.T) without an explicit transpose.
TRANS_B_DIM_NUMBERS = (((1,), (1,)), ((), ()))


def mlp_kernel(x_ref, w1_ref, b1_ref, w2_ref, b2_ref, w3_ref, b3_ref, o_ref):
    # fc1 + relu.  x is DMA'd as f32 and cast here (avoids an un-fused XLA cast pass
    # over the only batch-scaled input); f32 MXU accumulation.
    x_bf = x_ref[...].astype(jnp.bfloat16)
    h1 = jnp.dot(x_bf, w1_ref[...], preferred_element_type=jnp.float32)
    h1 = jnp.maximum(h1 + b1_ref[...], 0.0).astype(jnp.bfloat16)   # bf16 storage -> 1/2 spill bytes
    # fc2 + relu
    h2 = jnp.dot(h1, w2_ref[...], preferred_element_type=jnp.float32)
    h2 = jnp.maximum(h2 + b2_ref[...], 0.0).astype(jnp.bfloat16)
    # fc3 (out_features=1), transposed: (8,128) @ (TM,128)^T -> (8,TM).
    # Only row 0 of w3_ref is the real weight row; rows 1..7 are zero padding.
    h3 = lax.dot_general(w3_ref[...], h2, TRANS_B_DIM_NUMBERS,
                         preferred_element_type=jnp.float32)
    # bias + sigmoid only on the real row; stored block is lane-dense (1, TM).
    o_ref[...] = jax.nn.sigmoid(h3[0:1, :] + b3_ref[...])


def _pick_tile(b):
    """Batch tile: as large as possible (cap 1024), but >=2 tiles when the batch
    allows so both v7x TensorCores get work; 128 floor for tiny batches."""
    b128 = pl.cdiv(b, 128) * 128
    if b128 <= 128:
        return 128
    half = pl.cdiv(b128 // 2, 128) * 128
    return min(1024, max(128, half))


def prepare_params(params):
    """One-time conversion of PyTorch-layout params to the kernel's layout/dtypes."""
    w1, b1, w2, b2, w3, b3 = params
    w1_bf = w1.astype(jnp.bfloat16)
    w2_bf = w2.astype(jnp.bfloat16)
    # fc3 weight as a lane-dense row, padded to 8 sublanes -> full (8,128) tile.
    w3_rows = jnp.pad(w3.T, ((0, 7), (0, 0))).astype(jnp.bfloat16)
    b3_2d = jnp.reshape(b3, (1, 1)).astype(jnp.float32)
    return (w1_bf, b1.astype(jnp.float32), w2_bf, b2.astype(jnp.float32),
            w3_rows, b3_2d)


def net_forward(x, prepared, *, tm=None):
    """Forward pass of Net, batch-tiled Pallas TPU kernel."""
    w1_bf, b1, w2_bf, b2, w3_rows, b3_2d = prepared
    b, f_in = x.shape
    if tm is None:
        tm = _pick_tile(b)
    n_tiles = pl.cdiv(b, tm)          # ragged last block handled by Pallas (no jnp.pad copy)
    b_out = n_tiles * tm

    out = pl.pallas_call(
        mlp_kernel,
        out_shape=jax.ShapeDtypeStruct((1, b_out), jnp.float32),
        grid=(n_tiles,),
        in_specs=[
            pl.BlockSpec((tm, f_in), lambda i: (i, 0)),      # x: tiled over batch (f32)
            pl.BlockSpec(w1_bf.shape, lambda i: (0, 0)),     # weights/biases: constant block
            pl.BlockSpec(b1.shape, lambda i: (0, 0)),        #   index -> DMA'd once, VMEM-resident
            pl.BlockSpec(w2_bf.shape, lambda i: (0, 0)),
            pl.BlockSpec(b2.shape, lambda i: (0, 0)),
            pl.BlockSpec(w3_rows.shape, lambda i: (0, 0)),
            pl.BlockSpec(b3_2d.shape, lambda i: (0, 0)),
        ],
        out_specs=pl.BlockSpec((1, tm), lambda i: (0, i)),   # lane-dense single-row output
        compiler_params=pltpu.CompilerParams(
            dimension_semantics=("parallel",),               # megacore sharding on v7x
        ),
    )(x, w1_bf, b1, w2_bf, b2, w3_rows, b3_2d)

    # Columns >= b are ragged-block padding.  PyTorch .squeeze() removes all
    # size-1 dims (scalar when b == 1).
    return jnp.squeeze(out[0, :b])


def init_params(key, embedding_dim):
    """Deterministic parameter init (PyTorch nn.Linear-style uniform bounds)."""
    def linear(k, fan_in, fan_out):
        kw, kb = jax.random.split(k)
        bound = 1.0 / jnp.sqrt(fan_in)
        w = jax.random.uniform(kw, (fan_in, fan_out), jnp.float32, -bound, bound)
        bb = jax.random.uniform(kb, (1, fan_out), jnp.float32, -bound, bound)
        return w, bb

    k1, k2, k3 = jax.random.split(key, 3)
    w1, b1 = linear(k1, embedding_dim * 2, 512)
    w2, b2 = linear(k2, 512, 128)
    w3, b3 = linear(k3, 128, 1)
    return (w1, b1, w2, b2, w3, b3)


def reference_forward_f32(x, params):
    w1, b1, w2, b2, w3, b3 = params
    h = jnp.maximum(x @ w1 + b1, 0.0)
    h = jnp.maximum(h @ w2 + b2, 0.0)
    return jnp.squeeze(jax.nn.sigmoid(h @ w3 + b3), axis=-1)


def reference_forward_bf16(x, params):
    """Same bf16-operand / f32-accumulation math as the kernel."""
    w1, b1, w2, b2, w3, b3 = params
    h = jnp.dot(x.astype(jnp.bfloat16), w1.astype(jnp.bfloat16),
                preferred_element_type=jnp.float32)
    h = jnp.maximum(h + b1, 0.0).astype(jnp.bfloat16)
    h = jnp.dot(h, w2.astype(jnp.bfloat16), preferred_element_type=jnp.float32)
    h = jnp.maximum(h + b2, 0.0).astype(jnp.bfloat16)
    h = jnp.dot(h, w3.astype(jnp.bfloat16), preferred_element_type=jnp.float32) + b3
    return jnp.squeeze(jax.nn.sigmoid(h), axis=-1)


if __name__ == "__main__":
    embedding_dim = 32
    batch = 8

    key = jax.random.PRNGKey(0)
    kx, kp = jax.random.split(key)
    x = jax.random.normal(kx, (batch, embedding_dim * 2), dtype=jnp.float32)
    params = init_params(kp, embedding_dim)
    prepared = prepare_params(params)

    out = jax.block_until_ready(net_forward(x, prepared))

    ref_matched = reference_forward_bf16(x, params)   # same bf16/f32-acc math as kernel
    ref_f32 = reference_forward_f32(x, params)        # original f32 semantics

    assert out.shape == (batch,), f"bad output shape {out.shape}"
    assert jnp.allclose(out, ref_matched, atol=2e-3, rtol=2e-3), \
        "mismatch vs bf16-matched reference"
    assert jnp.allclose(out, ref_f32, atol=2e-2), \
        "mismatch vs f32 reference beyond bf16 tolerance"

    print("KERNEL_OK")
</pallas_src>

<mosaic_0001>
module attributes {stable_mosaic.version = 11 : i64} {
  func.func @mlp_kernel(%arg0: i32, %arg1: memref<128x64xf32, #tpu.memory_space<vmem>>, %arg2: memref<64x512xbf16, #tpu.memory_space<vmem>>, %arg3: memref<1x512xf32, #tpu.memory_space<vmem>>, %arg4: memref<512x128xbf16, #tpu.memory_space<vmem>>, %arg5: memref<1x128xf32, #tpu.memory_space<vmem>>, %arg6: memref<8x128xbf16, #tpu.memory_space<vmem>>, %arg7: memref<1x1xf32, #tpu.memory_space<vmem>>, %arg8: memref<1x128xf32, #tpu.memory_space<vmem>>) attributes {dimension_semantics = [#tpu.dimension_semantics<parallel>], iteration_bounds = array<i64: 1>, scalar_prefetch = 0 : i64, scratch_operands = 0 : i64, tpu.core_type = #tpu.core_type<tc>, window_params = [{transform_indices = @transform_0, window_bounds = array<i64: 128, 64>}, {pipeline_mode = #tpu.pipeline_mode<synchronous>, transform_indices = @transform_1, window_bounds = array<i64: 64, 512>}, {pipeline_mode = #tpu.pipeline_mode<synchronous>, transform_indices = @transform_2, window_bounds = array<i64: 1, 512>}, {pipeline_mode = #tpu.pipeline_mode<synchronous>, transform_indices = @transform_3, window_bounds = array<i64: 512, 128>}, {pipeline_mode = #tpu.pipeline_mode<synchronous>, transform_indices = @transform_4, window_bounds = array<i64: 1, 128>}, {pipeline_mode = #tpu.pipeline_mode<synchronous>, transform_indices = @transform_5, window_bounds = array<i64: 8, 128>}, {pipeline_mode = #tpu.pipeline_mode<synchronous>, transform_indices = @transform_6, window_bounds = array<i64: 1, 1>}, {transform_indices = @transform_7, window_bounds = array<i64: 1, 128>}]} {
    %c0 = arith.constant 0 : index
    %c0_0 = arith.constant 0 : index
    %0 = vector.load %arg1[%c0, %c0_0] : memref<128x64xf32, #tpu.memory_space<vmem>>, vector<128x64xf32>
    %1 = arith.truncf %0 : vector<128x64xf32> to vector<128x64xbf16>
    %c0_1 = arith.constant 0 : index
    %c0_2 = arith.constant 0 : index
    %2 = vector.load %arg2[%c0_1, %c0_2] : memref<64x512xbf16, #tpu.memory_space<vmem>>, vector<64x512xbf16>
    %cst = arith.constant dense<0.000000e+00> : vector<128x512xf32>
    %3 = tpu.matmul %1, %2, %cst {dimension_numbers = #tpu.dot_dimension_numbers<[1], [0], [0], [1], [0, 0, 1, 1], [], []>} : vector<128x64xbf16>, vector<64x512xbf16>, vector<128x512xf32> -> vector<128x512xf32>
    %c0_3 = arith.constant 0 : index
    %c0_4 = arith.constant 0 : index
    %4 = vector.load %arg3[%c0_3, %c0_4] : memref<1x512xf32, #tpu.memory_space<vmem>>, vector<1x512xf32>
    %5 = vector.broadcast %4 : vector<1x512xf32> to vector<128x512xf32>
    %6 = arith.addf %3, %5 : vector<128x512xf32>
    %cst_5 = arith.constant 0.000000e+00 : f32
    %7 = vector.broadcast %cst_5 : f32 to vector<128x512xf32>
    %8 = arith.maximumf %6, %7 : vector<128x512xf32>
    %9 = arith.truncf %8 : vector<128x512xf32> to vector<128x512xbf16>
    %c0_6 = arith.constant 0 : index
    %c0_7 = arith.constant 0 : index
    %10 = vector.load %arg4[%c0_6, %c0_7] : memref<512x128xbf16, #tpu.memory_space<vmem>>, vector<512x128xbf16>
    %cst_8 = arith.constant dense<0.000000e+00> : vector<128x128xf32>
    %11 = tpu.matmul %9, %10, %cst_8 {dimension_numbers = #tpu.dot_dimension_numbers<[1], [0], [0], [1], [0, 0, 1, 1], [], []>} : vector<128x512xbf16>, vector<512x128xbf16>, vector<128x128xf32> -> vector<128x128xf32>
    %c0_9 = arith.constant 0 : index
    %c0_10 = arith.constant 0 : index
    %12 = vector.load %arg5[%c0_9, %c0_10] : memref<1x128xf32, #tpu.memory_space<vmem>>, vector<1x128xf32>
    %13 = vector.broadcast %12 : vector<1x128xf32> to vector<128x128xf32>
    %14 = arith.addf %11, %13 : vector<128x128xf32>
    %cst_11 = arith.constant 0.000000e+00 : f32
    %15 = vector.broadcast %cst_11 : f32 to vector<128x128xf32>
    %16 = arith.maximumf %14, %15 : vector<128x128xf32>
    %17 = arith.truncf %16 : vector<128x128xf32> to vector<128x128xbf16>
    %c0_12 = arith.constant 0 : index
    %c0_13 = arith.constant 0 : index
    %18 = vector.load %arg6[%c0_12, %c0_13] : memref<8x128xbf16, #tpu.memory_space<vmem>>, vector<8x128xbf16>
    %cst_14 = arith.constant dense<0.000000e+00> : vector<8x128xf32>
    %19 = tpu.matmul %18, %17, %cst_14 {dimension_numbers = #tpu.dot_dimension_numbers<[1], [1], [0], [0], [0, 0, 1, 0], [], []>} : vector<8x128xbf16>, vector<128x128xbf16>, vector<8x128xf32> -> vector<8x128xf32>
    %20 = vector.extract_strided_slice %19 {offsets = [0, 0], sizes = [1, 128], strides = [1, 1]} : vector<8x128xf32> to vector<1x128xf32>
    %c0_15 = arith.constant 0 : index
    %c0_16 = arith.constant 0 : index
    %21 = vector.load %arg7[%c0_15, %c0_16] : memref<1x1xf32, #tpu.memory_space<vmem>>, vector<1x1xf32>
    %22 = vector.broadcast %21 : vector<1x1xf32> to vector<1x128xf32>
    %23 = arith.addf %20, %22 : vector<1x128xf32>
    %24 = arith.negf %23 : vector<1x128xf32>
    %25 = math.exp %24 : vector<1x128xf32>
    %cst_17 = arith.constant 1.000000e+00 : f32
    %26 = vector.broadcast %cst_17 : f32 to vector<1x128xf32>
    %27 = arith.addf %26, %25 : vector<1x128xf32>
    %28 = arith.divf %26, %27 : vector<1x128xf32>
    %c0_18 = arith.constant 0 : index
    %c0_19 = arith.constant 0 : index
    %29 = vector.load %arg8[%c0_18, %c0_19] : memref<1x128xf32, #tpu.memory_space<vmem>>, vector<1x128xf32>
    tpu.vector_store %arg8[%c0_18, %c0_19], %28 {strides = array<i32>} : memref<1x128xf32, #tpu.memory_space<vmem>>, vector<1x128xf32>,
    return
  }
  func.func @transform_0(%arg0: i32) -> (i32, i32) {
    %c0_i32 = arith.constant 0 : i32
    %c0_i32_0 = arith.constant 0 : i32
    return %arg0, %c0_i32 : i32, i32
  }
  func.func @transform_1(%arg0: i32) -> (i32, i32) {
    %c0_i32 = arith.constant 0 : i32
    %c0_i32_0 = arith.constant 0 : i32
    %c0_i32_1 = arith.constant 0 : i32
    return %c0_i32, %c0_i32_0 : i32, i32
  }
  func.func @transform_2(%arg0: i32) -> (i32, i32) {
    %c0_i32 = arith.constant 0 : i32
    %c0_i32_0 = arith.constant 0 : i32
    %c0_i32_1 = arith.constant 0 : i32
    return %c0_i32, %c0_i32_0 : i32, i32
  }
  func.func @transform_3(%arg0: i32) -> (i32, i32) {
    %c0_i32 = arith.constant 0 : i32
    %c0_i32_0 = arith.constant 0 : i32
    %c0_i32_1 = arith.constant 0 : i32
    return %c0_i32, %c0_i32_0 : i32, i32
  }
  func.func @transform_4(%arg0: i32) -> (i32, i32) {
    %c0_i32 = arith.constant 0 : i32
    %c0_i32_0 = arith.constant 0 : i32
    %c0_i32_1 = arith.constant 0 : i32
    return %c0_i32, %c0_i32_0 : i32, i32
  }
  func.func @transform_5(%arg0: i32) -> (i32, i32) {
    %c0_i32 = arith.constant 0 : i32
    %c0_i32_0 = arith.constant 0 : i32
    %c0_i32_1 = arith.constant 0 : i32
    return %c0_i32, %c0_i32_0 : i32, i32
  }
  func.func @transform_6(%arg0: i32) -> (i32, i32) {
    %c0_i32 = arith.constant 0 : i32
    %c0_i32_0 = arith.constant 0 : i32
    %c0_i32_1 = arith.constant 0 : i32
    return %c0_i32, %c0_i32_0 : i32, i32
  }
  func.func @transform_7(%arg0: i32) -> (i32, i32) {
    %c0_i32 = arith.constant 0 : i32
    %c0_i32_0 = arith.constant 0 : i32
    return %c0_i32, %arg0 : i32, i32
  }
}

</mosaic_0001>

<llo_original>
// kernel: tpu_custom_call.1
$region0: #{tpu_custom_call.1}
  #allocation0 [shape = 'u32[]', space=smem, size = 0x4, offset = 0x4, fixed_abs, tag = 'smem constant byte address 0x4 - core index']
  #allocation1 [shape = 'u32[144,128]{1,0:T(1,128)}', space=vmem, size = 0x12000, scoped, tag = 'internal scratch']
  #allocation2 [shape = 'f32[1,1]{1,0:T(1,128)S(1)}', space=vmem, size = 0x200, scoped, tag = 'scoped memory for tpu_custom_call.1']
  %s0 = inlined_call_operand.hbm [shape: f32[8,64], index: 0, kind: input, shape index: {}]
  %s1 = inlined_call_operand.hbm [shape: bf16[64,512], index: 1, kind: input, shape index: {}]
  %s2 = inlined_call_operand.vmem [shape: f32[1,512], index: 2, kind: input, shape index: {}]
  %s3 = inlined_call_operand.hbm [shape: bf16[512,128], index: 3, kind: input, shape index: {}]
  %s4 = inlined_call_operand.vmem [shape: f32[1,128], index: 4, kind: input, shape index: {}]
  %s5 = inlined_call_operand.vmem [shape: bf16[8,128], index: 5, kind: input, shape index: {}]
  %s6 = inlined_call_operand.<no memory space> [shape: f32[1,1], index: 6, kind: input, shape index: {}]
  %s7 = inlined_call_operand.hbm [shape: f32[1,128], index: 7, kind: output, shape index: {}]
  %s8 = sld [smem:[#allocation0]]
  $region50: #{tpu_custom_call.1} parent=0
    _
  %s10 = ssub.s32 1, %s8
  %s11 = scalar_select 0, %s10, %s8
  %v12 = vstv %s6
  %13 = vst [vmem:[#allocation2] sm:$0x1] %v12
  $region1: #{tpu_custom_call.1} parent=0
    #allocation3 [shape = 'u8[65536]{0}', space=vmem, size = 0x10000, scoped, tag = 'input window, operand 0, single buffered']
    #allocation4 [shape = 's32[1]{0}', space=sflag, size = 0x4, scoped, tag = 'scoped memory for tpu_custom_call.1']
    #allocation5 [shape = 's32[1]{0}', space=sflag, size = 0x4, scoped, tag = 'scoped memory for tpu_custom_call.1']
    #allocation6 [shape = 'u8[65536]{0}', space=vmem, size = 0x10000, scoped, tag = 'input window, operand 1, single buffered']
    #allocation7 [shape = 's32[1]{0}', space=sflag, size = 0x4, scoped, tag = 'scoped memory for tpu_custom_call.1']
    #allocation8 [shape = 'u8[131072]{0}', space=vmem, size = 0x20000, scoped, tag = 'input window, operand 3, single buffered']
    #allocation9 [shape = 'u8[512]{0}', space=vmem, size = 0x400, scoped, tag = 'output window, operand 0, single buffered']
    %14 = vsyncpa [#allocation4], 0
    %15 = vsyncpa [#allocation7], 0
    %16 = vsyncpa [#allocation5], 0
    // Predicated region
    $region2: #{tpu_custom_call.1} parent=1 // pred_check
      _
    $region3: #{tpu_custom_call.1} parent=1 // pred_check_branch
      %18 = sbr.rel (0) target = $region5
    $region4: #{tpu_custom_call.1} parent=1 // pred_region
      %s20 = ssub.s32 2048, 128
      %21 = vsyncadd [#allocation4], %s20
      %s22 = sshll.u32 [#allocation3], 4
      %s23 = int_to_ptr.vmem [resolvable:$true] %s22
      %28 = dma.hbm_to_vmem [thread:$0]  %s0, 128, %s23, [#allocation4], 128, 128, 8
    $region5: #{tpu_custom_call.1} parent=1 // pred_fallthru
      _
    // Predicated region
    $region6: #{tpu_custom_call.1} parent=1 // pred_check
      _
    $region7: #{tpu_custom_call.1} parent=1 // pred_check_branch
      %30 = sbr.rel (0) target = $region9
    $region8: #{tpu_custom_call.1} parent=1 // pred_region
      %s32 = ssub.s32 2048, 2048
      %33 = vsyncadd [#allocation7], %s32
      %s34 = sshll.u32 [#allocation6], 4
      %s35 = int_to_ptr.vmem [resolvable:$true] %s34
      %40 = dma.hbm_to_vmem [thread:$0]  %s1, 2048, %s35, [#allocation7], 256, 256, 16
    $region9: #{tpu_custom_call.1} parent=1 // pred_fallthru
      _
    // Predicated region
    $region10: #{tpu_custom_call.1} parent=1 // pred_check
      _
    $region11: #{tpu_custom_call.1} parent=1 // pred_check_branch
      %42 = sbr.rel (0) target = $region13
    $region12: #{tpu_custom_call.1} parent=1 // pred_region
      _
    $region13: #{tpu_custom_call.1} parent=1 // pred_fallthru
      _
    // Predicated region
    $region14: #{tpu_custom_call.1} parent=1 // pred_check
      _
    $region15: #{tpu_custom_call.1} parent=1 // pred_check_branch
      %44 = sbr.rel (0) target = $region17
    $region16: #{tpu_custom_call.1} parent=1 // pred_region
      %s46 = ssub.s32 4096, 4096
      %47 = vsyncadd [#allocation7], %s46
      %s48 = sshll.u32 [#allocation8], 4
      %s49 = int_to_ptr.vmem [resolvable:$true] %s48
      %54 = dma.hbm_to_vmem [thread:$0]  %s3, 4096, %s49, [#allocation7], 64, 64, 4
    $region17: #{tpu_custom_call.1} parent=1 // pred_fallthru
      _
    // Predicated region
    $region18: #{tpu_custom_call.1} parent=1 // pred_check
      _
    $region19: #{tpu_custom_call.1} parent=1 // pred_check_branch
      %56 = sbr.rel (0) target = $region21
    $region20: #{tpu_custom_call.1} parent=1 // pred_region
      _
    $region21: #{tpu_custom_call.1} parent=1 // pred_fallthru
      _
    // Predicated region
    $region22: #{tpu_custom_call.1} parent=1 // pred_check
      _
    $region23: #{tpu_custom_call.1} parent=1 // pred_check_branch
      %58 = sbr.rel (0) target = $region25
    $region24: #{tpu_custom_call.1} parent=1 // pred_region
      _
    $region25: #{tpu_custom_call.1} parent=1 // pred_fallthru
      _
    // Predicated region
    $region26: #{tpu_custom_call.1} parent=1 // pred_check
      _
    $region27: #{tpu_custom_call.1} parent=1 // pred_check_branch
      %60 = sbr.rel (0) target = $region29
    $region28: #{tpu_custom_call.1} parent=1 // pred_region
      _
    $region29: #{tpu_custom_call.1} parent=1 // pred_fallthru
      _
    // Predicated region
    $region30: #{tpu_custom_call.1} parent=1 // pred_check
      _
    $region31: #{tpu_custom_call.1} parent=1 // pred_check_branch
      %62 = sbr.rel (0) target = $region33
    $region32: #{tpu_custom_call.1} parent=1 // pred_region
      %63 = dma.done [#allocation4], 2048
    $region33: #{tpu_custom_call.1} parent=1 // pred_fallthru
      _
    // Predicated region
    $region34: #{tpu_custom_call.1} parent=1 // pred_check
      _
    $region35: #{tpu_custom_call.1} parent=1 // pred_check_branch
      %65 = sbr.rel (0) target = $region37
    $region36: #{tpu_custom_call.1} parent=1 // pred_region
      %66 = dma.done [#allocation7], 2048
    $region37: #{tpu_custom_call.1} parent=1 // pred_fallthru
      _
    // Predicated region
    $region38: #{tpu_custom_call.1} parent=1 // pred_check
      _
    $region39: #{tpu_custom_call.1} parent=1 // pred_check_branch
      %68 = sbr.rel (0) target = $region41
    $region40: #{tpu_custom_call.1} parent=1 // pred_region
      %69 = dma.done [#allocation7], 4096
    $region41: #{tpu_custom_call.1} parent=1 // pred_fallthru
      _
    %v71 = vld [vmem:[#allocation3] sm:$0xff]
    %v72 = vld [vmem:[#allocation3 + $0x8] sm:$0xff]
    %v73 = vld [vmem:[#allocation3 + $0x10] sm:$0xff]
    %v74 = vld [vmem:[#allocation3 + $0x18] sm:$0xff]
    %v75 = vld [vmem:[#allocation3 + $0x20] sm:$0xff]
    %v76 = vld [vmem:[#allocation3 + $0x28] sm:$0xff]
    %v77 = vld [vmem:[#allocation3 + $0x30] sm:$0xff]
    %v78 = vld [vmem:[#allocation3 + $0x38] sm:$0xff]
    %v79 = vld [vmem:[#allocation3 + $0x40] sm:$0xff]
    %v80 = vld [vmem:[#allocation3 + $0x48] sm:$0xff]
    %v81 = vld [vmem:[#allocation3 + $0x50] sm:$0xff]
    %v82 = vld [vmem:[#allocation3 + $0x58] sm:$0xff]
    %v83 = vld [vmem:[#allocation3 + $0x60] sm:$0xff]
    %v84 = vld [vmem:[#allocation3 + $0x68] sm:$0xff]
    %v85 = vld [vmem:[#allocation3 + $0x70] sm:$0xff]
    %v86 = vld [vmem:[#allocation3 + $0x78] sm:$0xff]
    %v87 = vpack.c.bf16 %v72, %v71
    %v88 = vpack.c.bf16 %v74, %v73
    %v89 = vpack.c.bf16 %v76, %v75
    %v90 = vpack.c.bf16 %v78, %v77
    %v91 = vpack.c.bf16 %v80, %v79
    %v92 = vpack.c.bf16 %v82, %v81
    %v93 = vpack.c.bf16 %v84, %v83
    %v94 = vpack.c.bf16 %v86, %v85
    %v95 = vld [vmem:[#allocation6] sm:$0xff]
    %v96 = vld [vmem:[#allocation6 + $0x8] sm:$0xff]
    %v97 = vld [vmem:[#allocation6 + $0x10] sm:$0xff]
    %v98 = vld [vmem:[#allocation6 + $0x18] sm:$0xff]
    %v99 = vld [vmem:[#allocation6 + $0x20] sm:$0xff]
    %v100 = vld [vmem:[#allocation6 + $0x28] sm:$0xff]
    %v101 = vld [vmem:[#allocation6 + $0x30] sm:$0xff]
    %v102 = vld [vmem:[#allocation6 + $0x38] sm:$0xff]
    %v103 = vld [vmem:[#allocation6 + $0x40] sm:$0xff]
    %v104 = vld [vmem:[#allocation6 + $0x48] sm:$0xff]
    %v105 = vld [vmem:[#allocation6 + $0x50] sm:$0xff]
    %v106 = vld [vmem:[#allocation6 + $0x58] sm:$0xff]
    %v107 = vld [vmem:[#allocation6 + $0x60] sm:$0xff]
    %v108 = vld [vmem:[#allocation6 + $0x68] sm:$0xff]
    %v109 = vld [vmem:[#allocation6 + $0x70] sm:$0xff]
    %v110 = vld [vmem:[#allocation6 + $0x78] sm:$0xff]
    %v111 = vld [vmem:[%s2] sm:$0xf]
    %v113 = vlaneseq
    %v114 = vshrl.u32 %v113, 7
    %v115 = vsub.s32 0, %v114
    %v116 = vrot.slane %v111, %v115
    %v117 = vlaneseq
    %v118 = vshrl.u32 %v117, 7
    %v119 = vsub.s32 1, %v118
    %v120 = vrot.slane %v111, %v119
    %v121 = vlaneseq
    %v122 = vshrl.u32 %v121, 7
    %v123 = vsub.s32 2, %v122
    %v124 = vrot.slane %v111, %v123
    %v125 = vlaneseq
    %v126 = vshrl.u32 %v125, 7
    %v127 = vsub.s32 3, %v126
    %v128 = vrot.slane %v111, %v127
    %v149 = vunpack.c.l.b16 %v95
    %v150 = vunpack.c.h.b16 %v95
    %v151 = vunpack.c.l.b16 %v96
    %v152 = vunpack.c.h.b16 %v96
    %v153 = vunpack.c.l.b16 %v97
    %v154 = vunpack.c.h.b16 %v97
    %v155 = vunpack.c.l.b16 %v98
    %v156 = vunpack.c.h.b16 %v98
    %v157 = vunpack.c.l.b16 %v99
    %v158 = vunpack.c.h.b16 %v99
    %v159 = vunpack.c.l.b16 %v100
    %v160 = vunpack.c.h.b16 %v100
    %v161 = vunpack.c.l.b16 %v101
    %v162 = vunpack.c.h.b16 %v101
    %v163 = vunpack.c.l.b16 %v102
    %v164 = vunpack.c.h.b16 %v102
    %v165 = vunpack.c.l.b16 %v103
    %v166 = vunpack.c.h.b16 %v103
    %v167 = vunpack.c.l.b16 %v104
    %v168 = vunpack.c.h.b16 %v104
    %v169 = vunpack.c.l.b16 %v105
    %v170 = vunpack.c.h.b16 %v105
    %v171 = vunpack.c.l.b16 %v106
    %v172 = vunpack.c.h.b16 %v106
    %v173 = vunpack.c.l.b16 %v107
    %v174 = vunpack.c.h.b16 %v107
    %v175 = vunpack.c.l.b16 %v108
    %v176 = vunpack.c.h.b16 %v108
    %v177 = vunpack.c.l.b16 %v109
    %v178 = vunpack.c.h.b16 %v109
    %v179 = vunpack.c.l.b16 %v110
    %v180 = vunpack.c.h.b16 %v110
    %v181 = vpack.c.b16 %v153, %v149
    %v182 = vpack.c.b16 %v154, %v150
    %v183 = vpack.c.b16 %v155, %v151
    %v184 = vpack.c.b16 %v156, %v152
    %v185 = vpack.c.b16 %v161, %v157
    %v186 = vpack.c.b16 %v162, %v158
    %v187 = vpack.c.b16 %v163, %v159
    %v188 = vpack.c.b16 %v164, %v160
    %v189 = vpack.c.b16 %v169, %v165
    %v190 = vpack.c.b16 %v170, %v166
    %v191 = vpack.c.b16 %v171, %v167
    %v192 = vpack.c.b16 %v172, %v168
    %v193 = vpack.c.b16 %v177, %v173
    %v194 = vpack.c.b16 %v178, %v174
    %v195 = vpack.c.b16 %v179, %v175
    %v196 = vpack.c.b16 %v180, %v176
    %vm213 = vcmask 523264
    %v215 = vsel %vm213, %v87, 0
    %v218 = vsel %vm213, %v88, 0
    %v221 = vsel %vm213, %v89, 0
    %v224 = vsel %vm213, %v90, 0
    %v227 = vsel %vm213, %v91, 0
    %v230 = vsel %vm213, %v92, 0
    %v233 = vsel %vm213, %v93, 0
    %v236 = vsel %vm213, %v94, 0
    %238 = vmatprep.subr.bf16.mxu0 0
    %239 = vmatpush1.bf16.msra.mxu0 0
    %240 = vmatprep.subr.bf16.mxu0 0
    %241 = vmatpush1.bf16.msra.mxu0 0
    %242 = vmatprep.subr.bf16.mxu0 0
    %243 = vmatpush1.bf16.msra.mxu0 0
    %244 = vmatprep.subr.bf16.mxu0 0
    %245 = vmatpush1.bf16.msra.mxu0 0
    %246 = vmatprep.subr.bf16.mxu0 %v194
    %247 = vmatpush1.bf16.msra.mxu0 %v193
    %248 = vmatprep.subr.bf16.mxu0 %v190
    %249 = vmatpush1.bf16.msra.mxu0 %v189
    %250 = vmatprep.subr.bf16.mxu0 %v186
    %251 = vmatpush1.bf16.msra.mxu0 %v185
    %252 = vmatprep.subr.bf16.mxu0 %v182
    %253 = vmatpush1.bf16.msra.mxu0 %v181
    %254 = vmatprep.subr.bf16.mxu0 0
    %255 = vmatpush2.bf16.msra.mxu0 0
    %256 = vmatprep.subr.bf16.mxu0 0
    %257 = vmatpush2.bf16.msra.mxu0 0
    %258 = vmatprep.subr.bf16.mxu0 0
    %259 = vmatpush2.bf16.msra.mxu0 0
    %260 = vmatprep.subr.bf16.mxu0 0
    %261 = vmatpush2.bf16.msra.mxu0 0
    %262 = vmatprep.subr.bf16.mxu0 0
    %263 = vmatpush2.bf16.msra.mxu0 0
    %264 = vmatprep.subr.bf16.mxu0 0
    %265 = vmatpush2.bf16.msra.mxu0 0
    %266 = vmatprep.subr.bf16.mxu0 0
    %267 = vmatpush2.bf16.msra.mxu0 0
    %268 = vmatprep.subr.bf16.mxu0 0
    %269 = vmatpush2.bf16.msra.mxu0 0
    %270 = vmatprep.mubr.bf16.mxu0 0
    %271 = vmatmul.mubr.bf16.gmra.mxu0 %v215
    %v272 = vpop.f32.mrf.mxu0
    %v273 = vadd.f32 %v116, %v272
    %v274 = vpop.f32.mrf.mxu0
    %v275 = vadd.f32 %v120, %v274
    %v276 = vpop.f32.mrf.mxu0
    %v277 = vadd.f32 %v116, %v276
    %v278 = vpop.f32.mrf.mxu0
    %v279 = vadd.f32 %v120, %v278
    %280 = vmatprep.mubr.bf16.mxu0 0
    %281 = vmatmul.mubr.bf16.gmra.mxu0 %v218
    %v282 = vpop.f32.mrf.mxu0
    %v283 = vadd.f32 %v116, %v282
    %v284 = vpop.f32.mrf.mxu0
    %v285 = vadd.f32 %v120, %v284
    %v286 = vpop.f32.mrf.mxu0
    %v287 = vadd.f32 %v116, %v286
    %v288 = vpop.f32.mrf.mxu0
    %v289 = vadd.f32 %v120, %v288
    %290 = vmatprep.mubr.bf16.mxu0 0
    %291 = vmatmul.mubr.bf16.gmra.mxu0 %v221
    %v292 = vpop.f32.mrf.mxu0
    %v293 = vadd.f32 %v116, %v292
    %v294 = vpop.f32.mrf.mxu0
    %v295 = vadd.f32 %v120, %v294
    %v296 = vpop.f32.mrf.mxu0
    %v297 = vadd.f32 %v116, %v296
    %v298 = vpop.f32.mrf.mxu0
    %v299 = vadd.f32 %v120, %v298
    %300 = vmatprep.mubr.bf16.mxu0 0
    %301 = vmatmul.mubr.bf16.gmra.mxu0 %v224
    %v302 = vpop.f32.mrf.mxu0
    %v303 = vadd.f32 %v116, %v302
    %v304 = vpop.f32.mrf.mxu0
    %v305 = vadd.f32 %v120, %v304
    %v306 = vpop.f32.mrf.mxu0
    %v307 = vadd.f32 %v116, %v306
    %v308 = vpop.f32.mrf.mxu0
    %v309 = vadd.f32 %v120, %v308
    %310 = vmatprep.mubr.bf16.mxu0 0
    %311 = vmatmul.mubr.bf16.gmra.mxu0 %v227
    %v312 = vpop.f32.mrf.mxu0
    %v313 = vadd.f32 %v116, %v312
    %v314 = vpop.f32.mrf.mxu0
    %v315 = vadd.f32 %v120, %v314
    %v316 = vpop.f32.mrf.mxu0
    %v317 = vadd.f32 %v116, %v316
    %v318 = vpop.f32.mrf.mxu0
    %v319 = vadd.f32 %v120, %v318
    %320 = vmatprep.mubr.bf16.mxu0 0
    %321 = vmatmul.mubr.bf16.gmra.mxu0 %v230
    %v322 = vpop.f32.mrf.mxu0
    %v323 = vadd.f32 %v116, %v322
    %v324 = vpop.f32.mrf.mxu0
    %v325 = vadd.f32 %v120, %v324
    %v326 = vpop.f32.mrf.mxu0
    %v327 = vadd.f32 %v116, %v326
    %v328 = vpop.f32.mrf.mxu0
    %v329 = vadd.f32 %v120, %v328
    %330 = vmatprep.mubr.bf16.mxu0 0
    %331 = vmatmul.mubr.bf16.gmra.mxu0 %v233
    %v332 = vpop.f32.mrf.mxu0
    %v333 = vadd.f32 %v116, %v332
    %v334 = vpop.f32.mrf.mxu0
    %v335 = vadd.f32 %v120, %v334
    %v336 = vpop.f32.mrf.mxu0
    %v337 = vadd.f32 %v116, %v336
    %v338 = vpop.f32.mrf.mxu0
    %v339 = vadd.f32 %v120, %v338
    %340 = vmatprep.mubr.bf16.mxu0 0
    %341 = vmatmul.mubr.bf16.gmra.mxu0 %v236
    %v342 = vpop.f32.mrf.mxu0
    %v343 = vadd.f32 %v116, %v342
    %v344 = vpop.f32.mrf.mxu0
    %v345 = vadd.f32 %v120, %v344
    %v346 = vpop.f32.mrf.mxu0
    %v347 = vadd.f32 %v116, %v346
    %v348 = vpop.f32.mrf.mxu0
    %v349 = vadd.f32 %v120, %v348
    %350 = vdwg.mxu0
    %351 = vmatprep.subr.bf16.mxu0 0
    %352 = vmatpush1.bf16.msra.mxu0 0
    %353 = vmatprep.subr.bf16.mxu0 0
    %354 = vmatpush1.bf16.msra.mxu0 0
    %355 = vmatprep.subr.bf16.mxu0 0
    %356 = vmatpush1.bf16.msra.mxu0 0
    %357 = vmatprep.subr.bf16.mxu0 0
    %358 = vmatpush1.bf16.msra.mxu0 0
    %359 = vmatprep.subr.bf16.mxu0 %v196
    %360 = vmatpush1.bf16.msra.mxu0 %v195
    %361 = vmatprep.subr.bf16.mxu0 %v192
    %362 = vmatpush1.bf16.msra.mxu0 %v191
    %363 = vmatprep.subr.bf16.mxu0 %v188
    %364 = vmatpush1.bf16.msra.mxu0 %v187
    %365 = vmatprep.subr.bf16.mxu0 %v184
    %366 = vmatpush1.bf16.msra.mxu0 %v183
    %367 = vmatprep.subr.bf16.mxu0 0
    %368 = vmatpush2.bf16.msra.mxu0 0
    %369 = vmatprep.subr.bf16.mxu0 0
    %370 = vmatpush2.bf16.msra.mxu0 0
    %371 = vmatprep.subr.bf16.mxu0 0
    %372 = vmatpush2.bf16.msra.mxu0 0
    %373 = vmatprep.subr.bf16.mxu0 0
    %374 = vmatpush2.bf16.msra.mxu0 0
    %375 = vmatprep.subr.bf16.mxu0 0
    %376 = vmatpush2.bf16.msra.mxu0 0
    %377 = vmatprep.subr.bf16.mxu0 0
    %378 = vmatpush2.bf16.msra.mxu0 0
    %379 = vmatprep.subr.bf16.mxu0 0
    %380 = vmatpush2.bf16.msra.mxu0 0
    %381 = vmatprep.subr.bf16.mxu0 0
    %382 = vmatpush2.bf16.msra.mxu0 0
    %383 = vmatprep.mubr.bf16.mxu0 0
    %384 = vmatmul.mubr.bf16.gmra.mxu0 %v215
    %v385 = vpop.f32.mrf.mxu0
    %v386 = vadd.f32 %v124, %v385
    %v387 = vpop.f32.mrf.mxu0
    %v388 = vadd.f32 %v128, %v387
    %v389 = vpop.f32.mrf.mxu0
    %v390 = vadd.f32 %v124, %v389
    %v391 = vpop.f32.mrf.mxu0
    %v392 = vadd.f32 %v128, %v391
    %393 = vmatprep.mubr.bf16.mxu0 0
    %394 = vmatmul.mubr.bf16.gmra.mxu0 %v218
    %v395 = vpop.f32.mrf.mxu0
    %v396 = vadd.f32 %v124, %v395
    %v397 = vpop.f32.mrf.mxu0
    %v398 = vadd.f32 %v128, %v397
    %v399 = vpop.f32.mrf.mxu0
    %v400 = vadd.f32 %v124, %v399
    %v401 = vpop.f32.mrf.mxu0
    %v402 = vadd.f32 %v128, %v401
    %403 = vmatprep.mubr.bf16.mxu0 0
    %404 = vmatmul.mubr.bf16.gmra.mxu0 %v221
    %v405 = vpop.f32.mrf.mxu0
    %v406 = vadd.f32 %v124, %v405
    %v407 = vpop.f32.mrf.mxu0
    %v408 = vadd.f32 %v128, %v407
    %v409 = vpop.f32.mrf.mxu0
    %v410 = vadd.f32 %v124, %v409
    %v411 = vpop.f32.mrf.mxu0
    %v412 = vadd.f32 %v128, %v411
    %413 = vmatprep.mubr.bf16.mxu0 0
    %414 = vmatmul.mubr.bf16.gmra.mxu0 %v224
    %v415 = vpop.f32.mrf.mxu0
    %v416 = vadd.f32 %v124, %v415
    %v417 = vpop.f32.mrf.mxu0
    %v418 = vadd.f32 %v128, %v417
    %v419 = vpop.f32.mrf.mxu0
    %v420 = vadd.f32 %v124, %v419
    %v421 = vpop.f32.mrf.mxu0
    %v422 = vadd.f32 %v128, %v421
    %423 = vmatprep.mubr.bf16.mxu0 0
    %424 = vmatmul.mubr.bf16.gmra.mxu0 %v227
    %v425 = vpop.f32.mrf.mxu0
    %v426 = vadd.f32 %v124, %v425
    %v427 = vpop.f32.mrf.mxu0
    %v428 = vadd.f32 %v128, %v427
    %v429 = vpop.f32.mrf.mxu0
    %v430 = vadd.f32 %v124, %v429
    %v431 = vpop.f32.mrf.mxu0
    %v432 = vadd.f32 %v128, %v431
    %433 = vmatprep.mubr.bf16.mxu0 0
    %434 = vmatmul.mubr.bf16.gmra.mxu0 %v230
    %v435 = vpop.f32.mrf.mxu0
    %v436 = vadd.f32 %v124, %v435
    %v437 = vpop.f32.mrf.mxu0
    %v438 = vadd.f32 %v128, %v437
    %v439 = vpop.f32.mrf.mxu0
    %v440 = vadd.f32 %v124, %v439
    %v441 = vpop.f32.mrf.mxu0
    %v442 = vadd.f32 %v128, %v441
    %443 = vmatprep.mubr.bf16.mxu0 0
    %444 = vmatmul.mubr.bf16.gmra.mxu0 %v233
    %v445 = vpop.f32.mrf.mxu0
    %v446 = vadd.f32 %v124, %v445
    %v447 = vpop.f32.mrf.mxu0
    %v448 = vadd.f32 %v128, %v447
    %v449 = vpop.f32.mrf.mxu0
    %v450 = vadd.f32 %v124, %v449
    %v451 = vpop.f32.mrf.mxu0
    %v452 = vadd.f32 %v128, %v451
    %453 = vmatprep.mubr.bf16.mxu0 0
    %454 = vmatmul.mubr.bf16.gmra.mxu0 %v236
    %v455 = vpop.f32.mrf.mxu0
    %v456 = vadd.f32 %v124, %v455
    %v457 = vpop.f32.mrf.mxu0
    %v458 = vadd.f32 %v128, %v457
    %v459 = vpop.f32.mrf.mxu0
    %v460 = vadd.f32 %v124, %v459
    %v461 = vpop.f32.mrf.mxu0
    %v462 = vadd.f32 %v128, %v461
    %463 = vdwg.mxu0
    %v464 = vmax.f32 %v273, 0.0
    %v465 = vmax.f32 %v275, 0.0
    %v466 = vmax.f32 %v386, 0.0
    %v467 = vmax.f32 %v388, 0.0
    %v468 = vmax.f32 %v277, 0.0
    %v469 = vmax.f32 %v279, 0.0
    %v470 = vmax.f32 %v390, 0.0
    %v471 = vmax.f32 %v392, 0.0
    %v472 = vmax.f32 %v283, 0.0
    %v473 = vmax.f32 %v285, 0.0
    %v474 = vmax.f32 %v396, 0.0
    %v475 = vmax.f32 %v398, 0.0
    %v476 = vmax.f32 %v287, 0.0
    %v477 = vmax.f32 %v289, 0.0
    %v478 = vmax.f32 %v400, 0.0
    %v479 = vmax.f32 %v402, 0.0
    %v480 = vmax.f32 %v293, 0.0
    %v481 = vmax.f32 %v295, 0.0
    %v482 = vmax.f32 %v406, 0.0
    %v483 = vmax.f32 %v408, 0.0
    %v484 = vmax.f32 %v297, 0.0
    %v485 = vmax.f32 %v299, 0.0
    %v486 = vmax.f32 %v410, 0.0
    %v487 = vmax.f32 %v412, 0.0
    %v488 = vmax.f32 %v303, 0.0
    %v489 = vmax.f32 %v305, 0.0
    %v490 = vmax.f32 %v416, 0.0
    %v491 = vmax.f32 %v418, 0.0
    %v492 = vmax.f32 %v307, 0.0
    %v493 = vmax.f32 %v309, 0.0
    %v494 = vmax.f32 %v420, 0.0
    %v495 = vmax.f32 %v422, 0.0
    %v496 = vmax.f32 %v313, 0.0
    %v497 = vmax.f32 %v315, 0.0
    %v498 = vmax.f32 %v426, 0.0
    %v499 = vmax.f32 %v428, 0.0
    %v500 = vmax.f32 %v317, 0.0
    %v501 = vmax.f32 %v319, 0.0
    %v502 = vmax.f32 %v430, 0.0
    %v503 = vmax.f32 %v432, 0.0
    %v504 = vmax.f32 %v323, 0.0
    %v505 = vmax.f32 %v325, 0.0
    %v506 = vmax.f32 %v436, 0.0
    %v507 = vmax.f32 %v438, 0.0
    %v508 = vmax.f32 %v327, 0.0
    %v509 = vmax.f32 %v329, 0.0
    %v510 = vmax.f32 %v440, 0.0
    %v511 = vmax.f32 %v442, 0.0
    %v512 = vmax.f32 %v333, 0.0
    %v513 = vmax.f32 %v335, 0.0
    %v514 = vmax.f32 %v446, 0.0
    %v515 = vmax.f32 %v448, 0.0
    %v516 = vmax.f32 %v337, 0.0
    %v517 = vmax.f32 %v339, 0.0
    %v518 = vmax.f32 %v450, 0.0
    %v519 = vmax.f32 %v452, 0.0
    %v520 = vmax.f32 %v343, 0.0
    %v521 = vmax.f32 %v345, 0.0
    %v522 = vmax.f32 %v456, 0.0
    %v523 = vmax.f32 %v458, 0.0
    %v524 = vmax.f32 %v347, 0.0
    %v525 = vmax.f32 %v349, 0.0
    %v526 = vmax.f32 %v460, 0.0
    %v527 = vmax.f32 %v462, 0.0
    %v528 = vpack.c.bf16 %v468, %v464
    %v529 = vpack.c.bf16 %v469, %v465
    %v530 = vpack.c.bf16 %v470, %v466
    %v531 = vpack.c.bf16 %v471, %v467
    %v532 = vpack.c.bf16 %v476, %v472
    %v533 = vpack.c.bf16 %v477, %v473
    %v534 = vpack.c.bf16 %v478, %v474
    %v535 = vpack.c.bf16 %v479, %v475
    %v536 = vpack.c.bf16 %v484, %v480
    %v537 = vpack.c.bf16 %v485, %v481
    %v538 = vpack.c.bf16 %v486, %v482
    %v539 = vpack.c.bf16 %v487, %v483
    %v540 = vpack.c.bf16 %v492, %v488
    %v541 = vpack.c.bf16 %v493, %v489
    %v542 = vpack.c.bf16 %v494, %v490
    %v543 = vpack.c.bf16 %v495, %v491
    %v544 = vpack.c.bf16 %v500, %v496
    %v545 = vpack.c.bf16 %v501, %v497
    %v546 = vpack.c.bf16 %v502, %v498
    %v547 = vpack.c.bf16 %v503, %v499
    %v548 = vpack.c.bf16 %v508, %v504
    %v549 = vpack.c.bf16 %v509, %v505
    %v550 = vpack.c.bf16 %v510, %v506
    %v551 = vpack.c.bf16 %v511, %v507
    %v552 = vpack.c.bf16 %v516, %v512
    %v553 = vpack.c.bf16 %v517, %v513
    %v554 = vpack.c.bf16 %v518, %v514
    %v555 = vpack.c.bf16 %v519, %v515
    %v556 = vpack.c.bf16 %v524, %v520
    %v557 = vpack.c.bf16 %v525, %v521
    %v558 = vpack.c.bf16 %v526, %v522
    %v559 = vpack.c.bf16 %v527, %v523
    %v560 = vld [vmem:[#allocation8] sm:$0xf]
    %v561 = vld [vmem:[#allocation8 + $0x4] sm:$0xf]
    %v562 = vld [vmem:[#allocation8 + $0x8] sm:$0xf]
    %v563 = vld [vmem:[#allocation8 + $0xc] sm:$0xf]
    %v564 = vld [vmem:[#allocation8 + $0x10] sm:$0xf]
    %v565 = vld [vmem:[#allocation8 + $0x14] sm:$0xf]
    %v566 = vld [vmem:[#allocation8 + $0x18] sm:$0xf]
    %v567 = vld [vmem:[#allocation8 + $0x1c] sm:$0xf]
    %v568 = vld [vmem:[#allocation8 + $0x20] sm:$0xf]
    %v569 = vld [vmem:[#allocation8 + $0x24] sm:$0xf]
    %v570 = vld [vmem:[#allocation8 + $0x28] sm:$0xf]
    %v571 = vld [vmem:[#allocation8 + $0x2c] sm:$0xf]
    %v572 = vld [vmem:[#allocation8 + $0x30] sm:$0xf]
    %v573 = vld [vmem:[#allocation8 + $0x34] sm:$0xf]
    %v574 = vld [vmem:[#allocation8 + $0x38] sm:$0xf]
    %v575 = vld [vmem:[#allocation8 + $0x3c] sm:$0xf]
    %v576 = vld [vmem:[#allocation8 + $0x40] sm:$0xf]
    %v577 = vld [vmem:[#allocation8 + $0x44] sm:$0xf]
    %v578 = vld [vmem:[#allocation8 + $0x48] sm:$0xf]
    %v579 = vld [vmem:[#allocation8 + $0x4c] sm:$0xf]
    %v580 = vld [vmem:[#allocation8 + $0x50] sm:$0xf]
    %v581 = vld [vmem:[#allocation8 + $0x54] sm:$0xf]
    %v582 = vld [vmem:[#allocation8 + $0x58] sm:$0xf]
    %v583 = vld [vmem:[#allocation8 + $0x5c] sm:$0xf]
    %v584 = vld [vmem:[#allocation8 + $0x60] sm:$0xf]
    %v585 = vld [vmem:[#allocation8 + $0x64] sm:$0xf]
    %v586 = vld [vmem:[#allocation8 + $0x68] sm:$0xf]
    %v587 = vld [vmem:[#allocation8 + $0x6c] sm:$0xf]
    %v588 = vld [vmem:[#allocation8 + $0x70] sm:$0xf]
    %v589 = vld [vmem:[#allocation8 + $0x74] sm:$0xf]
    %v590 = vld [vmem:[#allocation8 + $0x78] sm:$0xf]
    %v591 = vld [vmem:[#allocation8 + $0x7c] sm:$0xf]
    %v592 = vld [vmem:[#allocation8 + $0x80] sm:$0xf]
    %v593 = vld [vmem:[#allocation8 + $0x84] sm:$0xf]
    %v594 = vld [vmem:[#allocation8 + $0x88] sm:$0xf]
    %v595 = vld [vmem:[#allocation8 + $0x8c] sm:$0xf]
    %v596 = vld [vmem:[#allocation8 + $0x90] sm:$0xf]
    %v597 = vld [vmem:[#allocation8 + $0x94] sm:$0xf]
    %v598 = vld [vmem:[#allocation8 + $0x98] sm:$0xf]
    %v599 = vld [vmem:[#allocation8 + $0x9c] sm:$0xf]
    %v600 = vld [vmem:[#allocation8 + $0xa0] sm:$0xf]
    %v601 = vld [vmem:[#allocation8 + $0xa4] sm:$0xf]
    %v602 = vld [vmem:[#allocation8 + $0xa8] sm:$0xf]
    %v603 = vld [vmem:[#allocation8 + $0xac] sm:$0xf]
    %v604 = vld [vmem:[#allocation8 + $0xb0] sm:$0xf]
    %v605 = vld [vmem:[#allocation8 + $0xb4] sm:$0xf]
    %v606 = vld [vmem:[#allocation8 + $0xb8] sm:$0xf]
    %v607 = vld [vmem:[#allocation8 + $0xbc] sm:$0xf]
    %v608 = vld [vmem:[#allocation8 + $0xc0] sm:$0xf]
    %v609 = vld [vmem:[#allocation8 + $0xc4] sm:$0xf]
    %v610 = vld [vmem:[#allocation8 + $0xc8] sm:$0xf]
    %v611 = vld [vmem:[#allocation8 + $0xcc] sm:$0xf]
    %v612 = vld [vmem:[#allocation8 + $0xd0] sm:$0xf]
    %v613 = vld [vmem:[#allocation8 + $0xd4] sm:$0xf]
    %v614 = vld [vmem:[#allocation8 + $0xd8] sm:$0xf]
    %v615 = vld [vmem:[#allocation8 + $0xdc] sm:$0xf]
    %v616 = vld [vmem:[#allocation8 + $0xe0] sm:$0xf]
    %v617 = vld [vmem:[#allocation8 + $0xe4] sm:$0xf]
    %v618 = vld [vmem:[#allocation8 + $0xe8] sm:$0xf]
    %v619 = vld [vmem:[#allocation8 + $0xec] sm:$0xf]
    %v620 = vld [vmem:[#allocation8 + $0xf0] sm:$0xf]
    %v621 = vld [vmem:[#allocation8 + $0xf4] sm:$0xf]
    %v622 = vld [vmem:[#allocation8 + $0xf8] sm:$0xf]
    %v623 = vld [vmem:[#allocation8 + $0xfc] sm:$0xf]
    %v624 = vld [vmem:[%s4] sm:$0x1]
    %v626 = vlaneseq
    %v627 = vshrl.u32 %v626, 7
    %v628 = vsub.s32 0, %v627
    %v629 = vrot.slane %v624, %v628
    %v695 = vunpack.c.l.b16 %v560
    %v696 = vunpack.c.l.b16 %v561
    %v697 = vunpack.c.l.b16 %v562
    %v698 = vunpack.c.l.b16 %v563
    %v699 = vunpack.c.l.b16 %v564
    %v700 = vunpack.c.l.b16 %v565
    %v701 = vunpack.c.l.b16 %v566
    %v702 = vunpack.c.l.b16 %v567
    %v703 = vunpack.c.l.b16 %v568
    %v704 = vunpack.c.l.b16 %v569
    %v705 = vunpack.c.l.b16 %v570
    %v706 = vunpack.c.l.b16 %v571
    %v707 = vunpack.c.l.b16 %v572
    %v708 = vunpack.c.l.b16 %v573
    %v709 = vunpack.c.l.b16 %v574
    %v710 = vunpack.c.l.b16 %v575
    %v711 = vunpack.c.l.b16 %v576
    %v712 = vunpack.c.l.b16 %v577
    %v713 = vunpack.c.l.b16 %v578
    %v714 = vunpack.c.l.b16 %v579
    %v715 = vunpack.c.l.b16 %v580
    %v716 = vunpack.c.l.b16 %v581
    %v717 = vunpack.c.l.b16 %v582
    %v718 = vunpack.c.l.b16 %v583
    %v719 = vunpack.c.l.b16 %v584
    %v720 = vunpack.c.l.b16 %v585
    %v721 = vunpack.c.l.b16 %v586
    %v722 = vunpack.c.l.b16 %v587
    %v723 = vunpack.c.l.b16 %v588
    %v724 = vunpack.c.l.b16 %v589
    %v725 = vunpack.c.l.b16 %v590
    %v726 = vunpack.c.l.b16 %v591
    %v727 = vunpack.c.l.b16 %v592
    %v728 = vunpack.c.l.b16 %v593
    %v729 = vunpack.c.l.b16 %v594
    %v730 = vunpack.c.l.b16 %v595
    %v731 = vunpack.c.l.b16 %v596
    %v732 = vunpack.c.l.b16 %v597
    %v733 = vunpack.c.l.b16 %v598
    %v734 = vunpack.c.l.b16 %v599
    %v735 = vunpack.c.l.b16 %v600
    %v736 = vunpack.c.l.b16 %v601
    %v737 = vunpack.c.l.b16 %v602
    %v738 = vunpack.c.l.b16 %v603
    %v739 = vunpack.c.l.b16 %v604
    %v740 = vunpack.c.l.b16 %v605
    %v741 = vunpack.c.l.b16 %v606
    %v742 = vunpack.c.l.b16 %v607
    %v743 = vunpack.c.l.b16 %v608
    %v744 = vunpack.c.l.b16 %v609
    %v745 = vunpack.c.l.b16 %v610
    %v746 = vunpack.c.l.b16 %v611
    %v747 = vunpack.c.l.b16 %v612
    %v748 = vunpack.c.l.b16 %v613
    %v749 = vunpack.c.l.b16 %v614
    %v750 = vunpack.c.l.b16 %v615
    %v751 = vunpack.c.l.b16 %v616
    %v752 = vunpack.c.l.b16 %v617
    %v753 = vunpack.c.l.b16 %v618
    %v754 = vunpack.c.l.b16 %v619
    %v755 = vunpack.c.l.b16 %v620
    %v756 = vunpack.c.l.b16 %v621
    %v757 = vunpack.c.l.b16 %v622
    %v758 = vunpack.c.l.b16 %v623
    %v759 = vpack.c.b16 %v696, %v695
    %v760 = vpack.c.b16 %v698, %v697
    %v761 = vpack.c.b16 %v700, %v699
    %v762 = vpack.c.b16 %v702, %v701
    %v763 = vpack.c.b16 %v704, %v703
    %v764 = vpack.c.b16 %v706, %v705
    %v765 = vpack.c.b16 %v708, %v707
    %v766 = vpack.c.b16 %v710, %v709
    %v767 = vpack.c.b16 %v712, %v711
    %v768 = vpack.c.b16 %v714, %v713
    %v769 = vpack.c.b16 %v716, %v715
    %v770 = vpack.c.b16 %v718, %v717
    %v771 = vpack.c.b16 %v720, %v719
    %v772 = vpack.c.b16 %v722, %v721
    %v773 = vpack.c.b16 %v724, %v723
    %v774 = vpack.c.b16 %v726, %v725
    %v775 = vpack.c.b16 %v728, %v727
    %v776 = vpack.c.b16 %v730, %v729
    %v777 = vpack.c.b16 %v732, %v731
    %v778 = vpack.c.b16 %v734, %v733
    %v779 = vpack.c.b16 %v736, %v735
    %v780 = vpack.c.b16 %v738, %v737
    %v781 = vpack.c.b16 %v740, %v739
    %v782 = vpack.c.b16 %v742, %v741
    %v783 = vpack.c.b16 %v744, %v743
    %v784 = vpack.c.b16 %v746, %v745
    %v785 = vpack.c.b16 %v748, %v747
    %v786 = vpack.c.b16 %v750, %v749
    %v787 = vpack.c.b16 %v752, %v751
    %v788 = vpack.c.b16 %v754, %v753
    %v789 = vpack.c.b16 %v756, %v755
    %v790 = vpack.c.b16 %v758, %v757
    %823 = vmatprep.subr.bf16.mxu0 0
    %824 = vmatpush1.bf16.msra.mxu0 %v766
    %825 = vmatprep.subr.bf16.mxu0 0
    %826 = vmatpush1.bf16.msra.mxu0 %v765
    %827 = vmatprep.subr.bf16.mxu0 0
    %828 = vmatpush1.bf16.msra.mxu0 %v764
    %829 = vmatprep.subr.bf16.mxu0 0
    %830 = vmatpush1.bf16.msra.mxu0 %v763
    %831 = vmatprep.subr.bf16.mxu0 0
    %832 = vmatpush1.bf16.msra.mxu0 %v762
    %833 = vmatprep.subr.bf16.mxu0 0
    %834 = vmatpush1.bf16.msra.mxu0 %v761
    %835 = vmatprep.subr.bf16.mxu0 0
    %836 = vmatpush1.bf16.msra.mxu0 %v760
    %837 = vmatprep.subr.bf16.mxu0 0
    %838 = vmatpush1.bf16.msra.mxu0 %v759
    %839 = vmatprep.subr.bf16.mxu0 0
    %840 = vmatpush2.bf16.msra.mxu0 %v774
    %841 = vmatprep.subr.bf16.mxu0 0
    %842 = vmatpush2.bf16.msra.mxu0 %v773
    %843 = vmatprep.subr.bf16.mxu0 0
    %844 = vmatpush2.bf16.msra.mxu0 %v772
    %845 = vmatprep.subr.bf16.mxu0 0
    %846 = vmatpush2.bf16.msra.mxu0 %v771
    %847 = vmatprep.subr.bf16.mxu0 0
    %848 = vmatpush2.bf16.msra.mxu0 %v770
    %849 = vmatprep.subr.bf16.mxu0 0
    %850 = vmatpush2.bf16.msra.mxu0 %v769
    %851 = vmatprep.subr.bf16.mxu0 0
    %852 = vmatpush2.bf16.msra.mxu0 %v768
    %853 = vmatprep.subr.bf16.mxu0 0
    %854 = vmatpush2.bf16.msra.mxu0 %v767
    %855 = vmatprep.mubr.bf16.mxu0 %v529
    %856 = vmatmul.mubr.bf16.gmra.mxu0 %v528
    %v857 = vpop.f32.mrf.mxu0
    %v858 = vadd.f32 %v629, %v857
    %v859 = vpop.f32.mrf.mxu0
    %v860 = vpop.f32.mrf.mxu0
    %v861 = vadd.f32 %v629, %v860
    %v862 = vpop.f32.mrf.mxu0
    %863 = vmatprep.mubr.bf16.mxu0 %v533
    %864 = vmatmul.mubr.bf16.gmra.mxu0 %v532
    %v865 = vpop.f32.mrf.mxu0
    %v866 = vadd.f32 %v629, %v865
    %v867 = vpop.f32.mrf.mxu0
    %v868 = vpop.f32.mrf.mxu0
    %v869 = vadd.f32 %v629, %v868
    %v870 = vpop.f32.mrf.mxu0
    %871 = vmatprep.mubr.bf16.mxu0 %v537
    %872 = vmatmul.mubr.bf16.gmra.mxu0 %v536
    %v873 = vpop.f32.mrf.mxu0
    %v874 = vadd.f32 %v629, %v873
    %v875 = vpop.f32.mrf.mxu0
    %v876 = vpop.f32.mrf.mxu0
    %v877 = vadd.f32 %v629, %v876
    %v878 = vpop.f32.mrf.mxu0
    %879 = vmatprep.mubr.bf16.mxu0 %v541
    %880 = vmatmul.mubr.bf16.gmra.mxu0 %v540
    %v881 = vpop.f32.mrf.mxu0
    %v882 = vadd.f32 %v629, %v881
    %v883 = vpop.f32.mrf.mxu0
    %v884 = vpop.f32.mrf.mxu0
    %v885 = vadd.f32 %v629, %v884
    %v886 = vpop.f32.mrf.mxu0
    %887 = vmatprep.mubr.bf16.mxu0 %v545
    %888 = vmatmul.mubr.bf16.gmra.mxu0 %v544
    %v889 = vpop.f32.mrf.mxu0
    %v890 = vadd.f32 %v629, %v889
    %v891 = vpop.f32.mrf.mxu0
    %v892 = vpop.f32.mrf.mxu0
    %v893 = vadd.f32 %v629, %v892
    %v894 = vpop.f32.mrf.mxu0
    %895 = vmatprep.mubr.bf16.mxu0 %v549
    %896 = vmatmul.mubr.bf16.gmra.mxu0 %v548
    %v897 = vpop.f32.mrf.mxu0
    %v898 = vadd.f32 %v629, %v897
    %v899 = vpop.f32.mrf.mxu0
    %v900 = vpop.f32.mrf.mxu0
    %v901 = vadd.f32 %v629, %v900
    %v902 = vpop.f32.mrf.mxu0
    %903 = vmatprep.mubr.bf16.mxu0 %v553
    %904 = vmatmul.mubr.bf16.gmra.mxu0 %v552
    %v905 = vpop.f32.mrf.mxu0
    %v906 = vadd.f32 %v629, %v905
    %v907 = vpop.f32.mrf.mxu0
    %v908 = vpop.f32.mrf.mxu0
    %v909 = vadd.f32 %v629, %v908
    %v910 = vpop.f32.mrf.mxu0
    %911 = vmatprep.mubr.bf16.mxu0 %v557
    %912 = vmatmul.mubr.bf16.gmra.mxu0 %v556
    %v913 = vpop.f32.mrf.mxu0
    %v914 = vadd.f32 %v629, %v913
    %v915 = vpop.f32.mrf.mxu0
    %v916 = vpop.f32.mrf.mxu0
    %v917 = vadd.f32 %v629, %v916
    %v918 = vpop.f32.mrf.mxu0
    %919 = vdwg.mxu0
    %920 = vmatprep.subr.bf16.mxu0 0
    %921 = vmatpush1.bf16.msra.mxu0 %v782
    %922 = vmatprep.subr.bf16.mxu0 0
    %923 = vmatpush1.bf16.msra.mxu0 %v781
    %924 = vmatprep.subr.bf16.mxu0 0
    %925 = vmatpush1.bf16.msra.mxu0 %v780
    %926 = vmatprep.subr.bf16.mxu0 0
    %927 = vmatpush1.bf16.msra.mxu0 %v779
    %928 = vmatprep.subr.bf16.mxu0 0
    %929 = vmatpush1.bf16.msra.mxu0 %v778
    %930 = vmatprep.subr.bf16.mxu0 0
    %931 = vmatpush1.bf16.msra.mxu0 %v777
    %932 = vmatprep.subr.bf16.mxu0 0
    %933 = vmatpush1.bf16.msra.mxu0 %v776
    %934 = vmatprep.subr.bf16.mxu0 0
    %935 = vmatpush1.bf16.msra.mxu0 %v775
    %936 = vmatprep.subr.bf16.mxu0 0
    %937 = vmatpush2.bf16.msra.mxu0 %v790
    %938 = vmatprep.subr.bf16.mxu0 0
    %939 = vmatpush2.bf16.msra.mxu0 %v789
    %940 = vmatprep.subr.bf16.mxu0 0
    %941 = vmatpush2.bf16.msra.mxu0 %v788
    %942 = vmatprep.subr.bf16.mxu0 0
    %943 = vmatpush2.bf16.msra.mxu0 %v787
    %944 = vmatprep.subr.bf16.mxu0 0
    %945 = vmatpush2.bf16.msra.mxu0 %v786
    %946 = vmatprep.subr.bf16.mxu0 0
    %947 = vmatpush2.bf16.msra.mxu0 %v785
    %948 = vmatprep.subr.bf16.mxu0 0
    %949 = vmatpush2.bf16.msra.mxu0 %v784
    %950 = vmatprep.subr.bf16.mxu0 0
    %951 = vmatpush2.bf16.msra.mxu0 %v783
    %952 = vmatprep.mubr.bf16.mxu0 %v531
    %953 = vmatmul.mubr.bf16.gmra.mxu0 %v530
    %v954 = vpop.f32.mrf.mxu0
    %v955 = vadd.f32 %v858, %v954
    %v956 = vpop.f32.mrf.mxu0
    %v957 = vpop.f32.mrf.mxu0
    %v958 = vadd.f32 %v861, %v957
    %v959 = vpop.f32.mrf.mxu0
    %960 = vmatprep.mubr.bf16.mxu0 %v535
    %961 = vmatmul.mubr.bf16.gmra.mxu0 %v534
    %v962 = vpop.f32.mrf.mxu0
    %v963 = vadd.f32 %v866, %v962
    %v964 = vpop.f32.mrf.mxu0
    %v965 = vpop.f32.mrf.mxu0
    %v966 = vadd.f32 %v869, %v965
    %v967 = vpop.f32.mrf.mxu0
    %968 = vmatprep.mubr.bf16.mxu0 %v539
    %969 = vmatmul.mubr.bf16.gmra.mxu0 %v538
    %v970 = vpop.f32.mrf.mxu0
    %v971 = vadd.f32 %v874, %v970
    %v972 = vpop.f32.mrf.mxu0
    %v973 = vpop.f32.mrf.mxu0
    %v974 = vadd.f32 %v877, %v973
    %v975 = vpop.f32.mrf.mxu0
    %976 = vmatprep.mubr.bf16.mxu0 %v543
    %977 = vmatmul.mubr.bf16.gmra.mxu0 %v542
    %v978 = vpop.f32.mrf.mxu0
    %v979 = vadd.f32 %v882, %v978
    %v980 = vpop.f32.mrf.mxu0
    %v981 = vpop.f32.mrf.mxu0
    %v982 = vadd.f32 %v885, %v981
    %v983 = vpop.f32.mrf.mxu0
    %984 = vmatprep.mubr.bf16.mxu0 %v547
    %985 = vmatmul.mubr.bf16.gmra.mxu0 %v546
    %v986 = vpop.f32.mrf.mxu0
    %v987 = vadd.f32 %v890, %v986
    %v988 = vpop.f32.mrf.mxu0
    %v989 = vpop.f32.mrf.mxu0
    %v990 = vadd.f32 %v893, %v989
    %v991 = vpop.f32.mrf.mxu0
    %992 = vmatprep.mubr.bf16.mxu0 %v551
    %993 = vmatmul.mubr.bf16.gmra.mxu0 %v550
    %v994 = vpop.f32.mrf.mxu0
    %v995 = vadd.f32 %v898, %v994
    %v996 = vpop.f32.mrf.mxu0
    %v997 = vpop.f32.mrf.mxu0
    %v998 = vadd.f32 %v901, %v997
    %v999 = vpop.f32.mrf.mxu0
    %1000 = vmatprep.mubr.bf16.mxu0 %v555
    %1001 = vmatmul.mubr.bf16.gmra.mxu0 %v554
    %v1002 = vpop.f32.mrf.mxu0
    %v1003 = vadd.f32 %v906, %v1002
    %v1004 = vpop.f32.mrf.mxu0
    %v1005 = vpop.f32.mrf.mxu0
    %v1006 = vadd.f32 %v909, %v1005
    %v1007 = vpop.f32.mrf.mxu0
    %1008 = vmatprep.mubr.bf16.mxu0 %v559
    %1009 = vmatmul.mubr.bf16.gmra.mxu0 %v558
    %v1010 = vpop.f32.mrf.mxu0
    %v1011 = vadd.f32 %v914, %v1010
    %v1012 = vpop.f32.mrf.mxu0
    %v1013 = vpop.f32.mrf.mxu0
    %v1014 = vadd.f32 %v917, %v1013
    %v1015 = vpop.f32.mrf.mxu0
    %1016 = vdwg.mxu0
    %v1017 = vmax.f32 %v955, 0.0
    %v1018 = vmax.f32 %v958, 0.0
    %v1019 = vmax.f32 %v963, 0.0
    %v1020 = vmax.f32 %v966, 0.0
    %v1021 = vmax.f32 %v971, 0.0
    %v1022 = vmax.f32 %v974, 0.0
    %v1023 = vmax.f32 %v979, 0.0
    %v1024 = vmax.f32 %v982, 0.0
    %v1025 = vmax.f32 %v987, 0.0
    %v1026 = vmax.f32 %v990, 0.0
    %v1027 = vmax.f32 %v995, 0.0
    %v1028 = vmax.f32 %v998, 0.0
    %v1029 = vmax.f32 %v1003, 0.0
    %v1030 = vmax.f32 %v1006, 0.0
    %v1031 = vmax.f32 %v1011, 0.0
    %v1032 = vmax.f32 %v1014, 0.0
    %v1033 = vpack.c.bf16 %v1018, %v1017
    %v1034 = vpack.c.bf16 %v1020, %v1019
    %v1035 = vpack.c.bf16 %v1022, %v1021
    %v1036 = vpack.c.bf16 %v1024, %v1023
    %v1037 = vpack.c.bf16 %v1026, %v1025
    %v1038 = vpack.c.bf16 %v1028, %v1027
    %v1039 = vpack.c.bf16 %v1030, %v1029
    %v1040 = vpack.c.bf16 %v1032, %v1031
    %v1041 = vld [vmem:[%s5] sm:$0xf]
    %1042 = vmatprep.subr.bf16.mxu0 0
    %1043 = vmatpush1.bf16.xpose.msra.mxu0 %v1040
    %1044 = vmatprep.subr.bf16.mxu0 0
    %1045 = vmatpush1.bf16.xpose.msra.mxu0 %v1039
    %1046 = vmatprep.subr.bf16.mxu0 0
    %1047 = vmatpush1.bf16.xpose.msra.mxu0 %v1038
    %1048 = vmatprep.subr.bf16.mxu0 0
    %1049 = vmatpush1.bf16.xpose.msra.mxu0 %v1037
    %1050 = vmatprep.subr.bf16.mxu0 0
    %1051 = vmatpush1.bf16.xpose.msra.mxu0 %v1036
    %1052 = vmatprep.subr.bf16.mxu0 0
    %1053 = vmatpush1.bf16.xpose.msra.mxu0 %v1035
    %1054 = vmatprep.subr.bf16.mxu0 0
    %1055 = vmatpush1.bf16.xpose.msra.mxu0 %v1034
    %1056 = vmatprep.subr.bf16.mxu0 0
    %1057 = vmatpush1.bf16.xpose.msra.mxu0 %v1033
    %1058 = vmatprep.subr.bf16.mxu0 0
    %1059 = vmatpush2.bf16.xpose.msra.mxu0 0
    %1060 = vmatprep.subr.bf16.mxu0 0
    %1061 = vmatpush2.bf16.xpose.msra.mxu0 0
    %1062 = vmatprep.subr.bf16.mxu0 0
    %1063 = vmatpush2.bf16.xpose.msra.mxu0 0
    %1064 = vmatprep.subr.bf16.mxu0 0
    %1065 = vmatpush2.bf16.xpose.msra.mxu0 0
    %1066 = vmatprep.subr.bf16.mxu0 0
    %1067 = vmatpush2.bf16.xpose.msra.mxu0 0
    %1068 = vmatprep.subr.bf16.mxu0 0
    %1069 = vmatpush2.bf16.xpose.msra.mxu0 0
    %1070 = vmatprep.subr.bf16.mxu0 0
    %1071 = vmatpush2.bf16.xpose.msra.mxu0 0
    %1072 = vmatprep.subr.bf16.mxu0 0
    %1073 = vmatpush2.bf16.xpose.msra.mxu0 0
    %1074 = vmatprep.mubr.bf16.mxu0 0
    %1075 = vmatmul.mubr.bf16.gmra.mxu0 %v1041
    %v1076 = vpop.f32.mrf.mxu0
    %v1077 = vadd.f32 0.0, %v1076
    %v1078 = vpop.f32.mrf.mxu0
    %v1079 = vpop.f32.mrf.mxu0
    %v1080 = vpop.f32.mrf.mxu0
    %1081 = vdwg.mxu0
    %v1082 = vld [vmem:[#allocation2] sm:$0x1]
    %1084 = vset.pattern.permute.xlu0 0
    %1085 = vperm.xlu0 %1084, %v1082
    %v1086 = vpop.permute.xlu0 %1085
    %v1088 = vlaneseq
    %v1089 = vshrl.u32 %v1088, 7
    %v1090 = vsub.s32 0, %v1089
    %v1091 = vrot.slane %v1086, %v1090
    %v1092 = vadd.f32 %v1077, %v1091
    %v1093 = vxor.u32 %v1092, 2147483648
    %v1094 = vmul.f32 %v1093, 1.442695
    %v1095 = vpow.pop %v1094
    %v1096 = vadd.f32 %v1095, 1.0
    %v1097 = vrcp.pop %v1096
    %v1098 = vmul.f32 1.0, %v1097
    %1099 = vst [vmem:[#allocation9] sm:$0x1] %v1098
    // Predicated region
    $region42: #{tpu_custom_call.1} parent=1 // pred_check
      _
    $region43: #{tpu_custom_call.1} parent=1 // pred_check_branch
      %1101 = sbr.rel (0) target = $region45
    $region44: #{tpu_custom_call.1} parent=1 // pred_region
      %s1103 = ssub.s32 16, 16
      %1104 = vsyncadd [#allocation5], %s1103
      %s1106 = sshll.u32 [#allocation9], 4
      %s1107 = int_to_ptr.vmem [resolvable:$true] %s1106
      %1109 = dma.vmem_to_hbm [thread:$0]  %s1107, 16, %s7, [#allocation5]
    $region45: #{tpu_custom_call.1} parent=1 // pred_fallthru
      _
    // Predicated region
    $region46: #{tpu_custom_call.1} parent=1 // pred_check
      _
    $region47: #{tpu_custom_call.1} parent=1 // pred_check_branch
      %1111 = sbr.rel (0) target = $region49
    $region48: #{tpu_custom_call.1} parent=1 // pred_region
      %1112 = dma.done [#allocation5], 16
    $region49: #{tpu_custom_call.1} parent=1 // pred_fallthru
      _
    %1113 = vsyncpa [#allocation4], 1
    %1114 = vsyncpa [#allocation7], 1
    %1115 = vsyncpa [#allocation5], 1

</llo_original>
